<compile_context>
chip_gen: v5e
topology: v5e:2x2
jax: 0.10.0
libtpu: 0.0.40
codegen_flags: <defaults>
</compile_context>

<pallas_src>
import math
from functools import partial

import jax
import jax.numpy as jnp
from jax.experimental import pallas as pl
from jax.experimental.pallas import tpu as pltpu


def _round_up(x, m):
    return ((x + m - 1) // m) * m


# ----------------------------------------------------------------------------
# Pallas kernel: one (batch, L-tile) grid step.
#   out[j, :] = bias + sum_k window[k*dil + j*stride, :] @ W[k]
# implemented as a single fused im2col contraction on a slab scratch.
# ----------------------------------------------------------------------------
def _conv1d_kernel(x_ref, h_ref, w_ref, b_ref, o_ref, slab_ref, *,
                   kernel_size, dilation, stride, tile_l):
    # x_ref   : (s, C_in_pad)            body rows of the input window, s = tile_l*stride
    # h_ref   : (h_pad, C_in_pad)        halo rows (rows [s, s+h_pad) of the same window)
    # w_ref   : (K*C_in_pad, C_out_pad)  im2col weight matrix
    # b_ref   : (1, C_out_pad)           bias (f32)
    # o_ref   : (tile_l, C_out_pad)      output tile
    # slab_ref: (tile_l, K*C_in_pad)     VMEM scratch: im2col slab (compute dtype)
    s = x_ref.shape[0]
    c_in_pad = x_ref.shape[1]

    # Static tap loop: each tap is stored exactly once into its lane block of the
    # slab (the sublane shift / stride compaction happens in this single store).
    for k in range(kernel_size):
        start = k * dilation
        # rows of this tap living in the body block: start + j*stride < s
        n_body = min(tile_l, max(0, -(-(s - start) // stride)))
        n_halo = tile_l - n_body
        col = k * c_in_pad

        if n_body > 0:
            if stride == 1:
                src = x_ref[start:start + n_body, :]
            else:
                src = x_ref[pl.ds(start, n_body, stride), :]
            slab_ref[:n_body, col:col + c_in_pad] = src

        if n_halo > 0:
            h_start = start + n_body * stride - s
            if stride == 1:
                src = h_ref[h_start:h_start + n_halo, :]
            else:
                src = h_ref[pl.ds(h_start, n_halo, stride), :]
            slab_ref[n_body:, col:col + c_in_pad] = src

    # Single MXU contraction over K*C_in_pad with f32 accumulation.
    acc = jnp.dot(slab_ref[...], w_ref[...], preferred_element_type=jnp.float32)
    acc = acc + b_ref[...]          # f32 epilogue (broadcast over tile_l rows)
    o_ref[...] = acc.astype(o_ref.dtype)


# ----------------------------------------------------------------------------
# Module wrapper replicating Conv1dEv's padding-mode logic.
# ----------------------------------------------------------------------------
class Conv1dEvPallas:
    def __init__(self, in_channels, out_channels, kernel_size, stride=1,
                 dilation=1, padding_mode='same', bias=True,
                 use_weight_norm=False, groups=1, key=None,
                 compute_dtype=jnp.float32, out_dtype=None, max_tile_l=512):
        assert groups == 1  # TODO(synk): grouped conv not implemented in the Pallas kernel
        self.in_channels = in_channels
        self.out_channels = out_channels
        self.kernel_size = kernel_size
        self.stride = stride
        self.dilation = dilation
        self.use_weight_norm = use_weight_norm
        # NOTE: compute_dtype=bf16 is a documented precision opt-in (MXU operands);
        # accumulation is f32 either way.  Default f32 matches torch.nn.Conv1d.
        self.compute_dtype = compute_dtype
        self.out_dtype = out_dtype
        self.max_tile_l = max_tile_l
        self.cutoff = False
        self.causal_padding = 0

        if padding_mode == 'valid':
            padding = 0
        elif padding_mode == 'full':
            padding = dilation * (kernel_size - 1)
        elif padding_mode == 'same':
            assert stride == 1, "Stride should be 1 for 'same' padding mode"
            if kernel_size % 2 == 0:
                padding = dilation * kernel_size // 2
                self.cutoff = True
            else:
                padding = dilation * (kernel_size - 1) // 2
        elif padding_mode == 'causal':
            padding = 0
            self.causal_padding = dilation * (kernel_size - 1)
        else:
            raise ValueError("Unsupported padding mode.")
        self.padding = padding

        # Deterministic init matching torch.nn.Conv1d defaults.
        if key is None:
            key = jax.random.PRNGKey(0)
        kw, kb = jax.random.split(key)
        bound = 1.0 / math.sqrt(in_channels * kernel_size)
        self.weight = jax.random.uniform(                     # weight_norm's "v"
            kw, (out_channels, in_channels, kernel_size),
            minval=-bound, maxval=bound, dtype=jnp.float32)
        if bias:
            self.bias = jax.random.uniform(
                kb, (out_channels,), minval=-bound, maxval=bound,
                dtype=jnp.float32)
        else:
            self.bias = jnp.zeros((out_channels,), jnp.float32)

        if use_weight_norm:
            # Store g separately (initialized to ||v||, i.e. identity for fresh
            # init) so loaded checkpoints with a learned g stay correct.
            self.weight_g = jnp.sqrt(
                jnp.sum(self.weight * self.weight, axis=(1, 2), keepdims=True))
        else:
            self.weight_g = None

    def effective_weight(self):
        w = self.weight
        if self.use_weight_norm:
            norm = jnp.sqrt(jnp.sum(w * w, axis=(1, 2), keepdims=True))
            w = self.weight_g * w / norm
        return w

    def __call__(self, feat):
        """feat: (B, C_in, L)  ->  (B, C_out, L_out)   (matches PyTorch NCL)."""
        b, c_in, l_in = feat.shape
        assert c_in == self.in_channels
        k, d, st = self.kernel_size, self.dilation, self.stride

        pad_left = self.padding + self.causal_padding
        pad_right = self.padding
        l_conv = l_in + pad_left + pad_right
        eff_k = d * (k - 1) + 1
        l_out = (l_conv - eff_k) // st + 1
        assert l_out > 0, "input too short for this kernel/padding configuration"

        # Lane-dense channels.
        c_in_pad = _round_up(c_in, 128)
        c_out_pad = _round_up(self.out_channels, 128)
        halo = d * (k - 1)
        h_pad = max(_round_up(halo, 8), 8)

        cdt = self.compute_dtype
        in_bytes = jnp.dtype(cdt).itemsize
        out_store_dtype = self.out_dtype if self.out_dtype is not None else feat.dtype
        out_bytes = jnp.dtype(out_store_dtype).itemsize

        # --- generation-aware VMEM policy (v5e/v6e: 128 MiB, v7x: 64 MiB). ---
        try:
            vmem_phys = int(getattr(pltpu.get_tpu_info(),
                                    "vmem_capacity_bytes", 64 * 2**20))
        except Exception:
            vmem_phys = 64 * 2**20
        if vmem_phys >= 100 * 2**20:          # v5e / v6e
            step_budget, vmem_cap = 24 * 2**20, 96 * 2**20
        else:                                 # v7x (or unknown -> conservative)
            step_budget, vmem_cap = 14 * 2**20, 48 * 2**20

        def _step_bytes(tl):
            s_ = tl * st
            body = s_ * c_in_pad * in_bytes
            halo_b = h_pad * c_in_pad * in_bytes
            w_b = k * c_in_pad * c_out_pad * in_bytes
            bias_b = 8 * c_out_pad * 4
            out_b = tl * c_out_pad * out_bytes
            slab = tl * k * c_in_pad * in_bytes            # scratch (single buffer)
            taps = 2 * tl * c_in_pad * in_bytes            # transient shifted-slice copies
            acc = 2 * tl * c_out_pad * 4                   # f32 matmul result + bias add
            return 2 * (body + halo_b + w_b + bias_b + out_b) + slab + taps + acc

        # --- L tile: a positive multiple of h_pad (so the halo view's block index
        # --- is exact), sized against the per-step VMEM budget.
        tile_l = min(_round_up(max(self.max_tile_l, h_pad), h_pad),
                     _round_up(l_out, h_pad))
        if b == 1 and l_out > h_pad:
            # Guarantee >= 2 L-tiles so both v7x TensorCores get a shard.
            tile_l = min(tile_l, _round_up(-(-l_out // 2), h_pad))
        while tile_l > h_pad and _step_bytes(tile_l) > step_budget:
            tile_l = max(h_pad, _round_up(tile_l // 2, h_pad))

        lt = -(-l_out // tile_l)
        s = tile_l * st
        hb = s // h_pad                       # halo blocks per body block
        l_pad_total = lt * s + h_pad          # body rows + last tile's halo

        # --- layout glue: NCL -> NLC, fused conv/tile/channel zero-padding. ---
        # TODO(synk): keep activations NLC across the prenet stack to drop these
        # per-layer transpose / pad HBM passes entirely.
        x_nlc = jnp.transpose(feat, (0, 2, 1)).astype(cdt)
        x_nlc = jnp.pad(x_nlc, ((0, 0),
                                (pad_left, l_pad_total - l_in - pad_left),
                                (0, c_in_pad - c_in)))

        # Weights: (C_out, C_in, K) -> (K*C_in_pad, C_out_pad) matching the slab.
        w = jnp.transpose(self.effective_weight(), (2, 1, 0))      # (K, C_in, C_out)
        w = jnp.pad(w, ((0, 0), (0, c_in_pad - c_in),
                        (0, c_out_pad - self.out_channels)))
        w2d = w.reshape(k * c_in_pad, c_out_pad).astype(cdt)
        bias2d = jnp.pad(self.bias, (0, c_out_pad - self.out_channels)
                         ).reshape(1, c_out_pad).astype(jnp.float32)

        kern = partial(_conv1d_kernel, kernel_size=k, dilation=d, stride=st,
                       tile_l=tile_l)

        # Advisory cost estimate with true (unpadded) channel counts.
        flops = 2 * b * l_out * k * c_in * self.out_channels
        bytes_accessed = int(b * l_in * c_in * in_bytes
                             + k * c_in * self.out_channels * in_bytes
                             + self.out_channels * 4
                             + b * l_out * self.out_channels * out_bytes)
        vmem_limit = int(min(max(_step_bytes(tile_l) + 4 * 2**20, 32 * 2**20),
                             vmem_cap))

        out_full = pl.pallas_call(
            kern,
            out_shape=jax.ShapeDtypeStruct((b, lt * tile_l, c_out_pad),
                                           out_store_dtype),
            grid=(b, lt),
            in_specs=[
                # body rows [li*s, (li+1)*s) of the padded NLC input
                pl.BlockSpec((None, s, c_in_pad), lambda bi, li: (bi, li, 0)),
                # halo rows [(li+1)*s, (li+1)*s + h_pad): same array, h_pad-blocked view
                pl.BlockSpec((None, h_pad, c_in_pad),
                             lambda bi, li: (bi, (li + 1) * hb, 0)),
                # grid-constant weight / bias blocks (DMA'd once; the second pipeline
                # buffer is the only waste and is included in the VMEM budget).
                pl.BlockSpec((k * c_in_pad, c_out_pad), lambda bi, li: (0, 0)),
                pl.BlockSpec((1, c_out_pad), lambda bi, li: (0, 0)),
            ],
            out_specs=pl.BlockSpec((None, tile_l, c_out_pad),
                                   lambda bi, li: (bi, li, 0)),
            scratch_shapes=[pltpu.VMEM((tile_l, k * c_in_pad), cdt)],
            compiler_params=pltpu.CompilerParams(
                dimension_semantics=("parallel", "parallel"),
                vmem_limit_bytes=vmem_limit),
            cost_estimate=pl.CostEstimate(flops=flops, transcendentals=0,
                                          bytes_accessed=bytes_accessed),
        )(x_nlc, x_nlc, w2d, bias2d)

        out = out_full[:, :l_out, :self.out_channels]
        out = jnp.transpose(out, (0, 2, 1))            # back to (B, C_out, L_out)
        if self.cutoff:
            out = out[:, :, :-self.dilation]
        return out


# ----------------------------------------------------------------------------
# Pure-JAX reference (lax conv) for correctness checking.
# ----------------------------------------------------------------------------
def _ref_conv1dev(module: Conv1dEvPallas, feat):
    w = module.effective_weight()
    if module.compute_dtype != jnp.float32:
        # Match the kernel's MXU-operand precision (accumulation is f32 either way).
        feat = feat.astype(module.compute_dtype).astype(jnp.float32)
        w = w.astype(module.compute_dtype).astype(jnp.float32)
    pad_left = module.padding + module.causal_padding
    pad_right = module.padding
    out = jax.lax.conv_general_dilated(
        feat.astype(jnp.float32), w.astype(jnp.float32),
        window_strides=(module.stride,),
        padding=[(pad_left, pad_right)], rhs_dilation=(module.dilation,),
        dimension_numbers=('NCH', 'OIH', 'NCH'))
    out = out + module.bias[None, :, None]
    if module.cutoff:
        out = out[:, :, :-module.dilation]
    return out


if __name__ == "__main__":
    key = jax.random.PRNGKey(0)
    kx, kp1, kp2, kp3, kp4, kp5 = jax.random.split(key, 6)

    B, C_IN, C_OUT, L = 2, 4, 8, 16
    x = jax.random.normal(kx, (B, C_IN, L), dtype=jnp.float32)

    configs = [
        # odd-kernel 'same', strict f32 (default)
        (dict(kernel_size=3, padding_mode='same', dilation=1, key=kp1), 1e-4),
        # even kernel -> cutoff, dilation 2
        (dict(kernel_size=4, padding_mode='same', dilation=2, key=kp2), 1e-4),
        # causal + weight_norm
        (dict(kernel_size=3, padding_mode='causal', dilation=2, key=kp3,
              use_weight_norm=True), 1e-4),
        # stride > 1 (strided tap compaction into the slab)
        (dict(kernel_size=5, padding_mode='valid', stride=2, dilation=1, key=kp4), 1e-4),
        # bf16 MXU operands + bf16 output (explicit opt-in), looser tolerance
        (dict(kernel_size=3, padding_mode='same', dilation=1, key=kp5,
              compute_dtype=jnp.bfloat16, out_dtype=jnp.bfloat16), 2e-2),
    ]

    for cfg, tol in configs:
        mod = Conv1dEvPallas(C_IN, C_OUT, **cfg)
        out = jax.block_until_ready(mod(x))
        ref = _ref_conv1dev(mod, x)
        assert out.shape == ref.shape, (out.shape, ref.shape)
        assert jnp.allclose(out.astype(jnp.float32), ref, atol=tol, rtol=tol), \
            f"mismatch for {cfg}"

    # Multi-tile + batch==1 path: grid = (1, 4), exercises the halo view across
    # tiles and the guaranteed 2-way L split for dual-TensorCore parts.
    x_long = jax.random.normal(jax.random.fold_in(kx, 1), (1, C_IN, 64),
                               dtype=jnp.float32)
    mod = Conv1dEvPallas(C_IN, C_OUT, kernel_size=3, padding_mode='same',
                         dilation=2, key=kp1, max_tile_l=16)
    out = jax.block_until_ready(mod(x_long))
    ref = _ref_conv1dev(mod, x_long)
    assert out.shape == ref.shape, (out.shape, ref.shape)
    assert jnp.allclose(out, ref, atol=1e-4, rtol=1e-4), "mismatch for multi-tile"

    print("KERNEL_OK")
</pallas_src>

<mosaic_0001>
module attributes {stable_mosaic.version = 11 : i64} {
  func.func @_conv1d_kernel(%arg0: i32, %arg1: i32, %arg2: memref<1x16x128xf32, #tpu.memory_space<vmem>>, %arg3: memref<1x8x128xf32, #tpu.memory_space<vmem>>, %arg4: memref<384x128xf32, #tpu.memory_space<vmem>>, %arg5: memref<1x128xf32, #tpu.memory_space<vmem>>, %arg6: memref<1x16x128xf32, #tpu.memory_space<vmem>>, %arg7: memref<16x384xf32, #tpu.memory_space<vmem>>) attributes {dimension_semantics = [#tpu.dimension_semantics<parallel>, #tpu.dimension_semantics<parallel>], iteration_bounds = array<i64: 2, 1>, scalar_prefetch = 0 : i64, scratch_operands = 1 : i64, tpu.core_type = #tpu.core_type<tc>, window_params = [{transform_indices = @transform_0, window_bounds = array<i64: 1, 16, 128>}, {transform_indices = @transform_1, window_bounds = array<i64: 1, 8, 128>}, {pipeline_mode = #tpu.pipeline_mode<synchronous>, transform_indices = @transform_2, window_bounds = array<i64: 384, 128>}, {pipeline_mode = #tpu.pipeline_mode<synchronous>, transform_indices = @transform_3, window_bounds = array<i64: 1, 128>}, {transform_indices = @transform_4, window_bounds = array<i64: 1, 16, 128>}]} {
    %c0 = arith.constant 0 : index
    %c0_0 = arith.constant 0 : index
    %c0_1 = arith.constant 0 : index
    %0 = vector.load %arg2[%c0, %c0_0, %c0_1] : memref<1x16x128xf32, #tpu.memory_space<vmem>>, vector<1x16x128xf32>
    %1 = vector.shape_cast %0 : vector<1x16x128xf32> to vector<16x128xf32>
    %c0_2 = arith.constant 0 : index
    %c0_3 = arith.constant 0 : index
    %2 = vector.load %arg7[%c0_2, %c0_3] : memref<16x384xf32, #tpu.memory_space<vmem>>, vector<16x128xf32>
    tpu.vector_store %arg7[%c0_2, %c0_3], %1 {strides = array<i32>} : memref<16x384xf32, #tpu.memory_space<vmem>>, vector<16x128xf32>,
    %c0_4 = arith.constant 0 : index
    %c1 = arith.constant 1 : index
    %c0_5 = arith.constant 0 : index
    %3 = vector.load %arg2[%c0_4, %c1, %c0_5] : memref<1x16x128xf32, #tpu.memory_space<vmem>>, vector<1x15x128xf32>
    %4 = vector.shape_cast %3 : vector<1x15x128xf32> to vector<15x128xf32>
    %c0_6 = arith.constant 0 : index
    %c128 = arith.constant 128 : index
    %5 = vector.load %arg7[%c0_6, %c128] : memref<16x384xf32, #tpu.memory_space<vmem>>, vector<15x128xf32>
    tpu.vector_store %arg7[%c0_6, %c128], %4 {strides = array<i32>} : memref<16x384xf32, #tpu.memory_space<vmem>>, vector<15x128xf32>,
    %c0_7 = arith.constant 0 : index
    %c0_8 = arith.constant 0 : index
    %c0_9 = arith.constant 0 : index
    %6 = vector.load %arg3[%c0_7, %c0_8, %c0_9] : memref<1x8x128xf32, #tpu.memory_space<vmem>>, vector<1x1x128xf32>
    %7 = vector.shape_cast %6 : vector<1x1x128xf32> to vector<1x128xf32>
    %c15 = arith.constant 15 : index
    %c128_10 = arith.constant 128 : index
    %8 = vector.load %arg7[%c15, %c128_10] : memref<16x384xf32, #tpu.memory_space<vmem>>, vector<1x128xf32>
    tpu.vector_store %arg7[%c15, %c128_10], %7 {strides = array<i32>} : memref<16x384xf32, #tpu.memory_space<vmem>>, vector<1x128xf32>,
    %c0_11 = arith.constant 0 : index
    %c2 = arith.constant 2 : index
    %c0_12 = arith.constant 0 : index
    %9 = vector.load %arg2[%c0_11, %c2, %c0_12] : memref<1x16x128xf32, #tpu.memory_space<vmem>>, vector<1x14x128xf32>
    %10 = vector.shape_cast %9 : vector<1x14x128xf32> to vector<14x128xf32>
    %c0_13 = arith.constant 0 : index
    %c256 = arith.constant 256 : index
    %11 = vector.load %arg7[%c0_13, %c256] : memref<16x384xf32, #tpu.memory_space<vmem>>, vector<14x128xf32>
    tpu.vector_store %arg7[%c0_13, %c256], %10 {strides = array<i32>} : memref<16x384xf32, #tpu.memory_space<vmem>>, vector<14x128xf32>,
    %c0_14 = arith.constant 0 : index
    %c0_15 = arith.constant 0 : index
    %c0_16 = arith.constant 0 : index
    %12 = vector.load %arg3[%c0_14, %c0_15, %c0_16] : memref<1x8x128xf32, #tpu.memory_space<vmem>>, vector<1x2x128xf32>
    %13 = vector.shape_cast %12 : vector<1x2x128xf32> to vector<2x128xf32>
    %c14 = arith.constant 14 : index
    %c256_17 = arith.constant 256 : index
    %14 = vector.load %arg7[%c14, %c256_17] : memref<16x384xf32, #tpu.memory_space<vmem>>, vector<2x128xf32>
    tpu.vector_store %arg7[%c14, %c256_17], %13 {strides = array<i32>} : memref<16x384xf32, #tpu.memory_space<vmem>>, vector<2x128xf32>,
    %c0_18 = arith.constant 0 : index
    %c0_19 = arith.constant 0 : index
    %15 = vector.load %arg7[%c0_18, %c0_19] : memref<16x384xf32, #tpu.memory_space<vmem>>, vector<16x384xf32>
    %c0_20 = arith.constant 0 : index
    %c0_21 = arith.constant 0 : index
    %16 = vector.load %arg4[%c0_20, %c0_21] : memref<384x128xf32, #tpu.memory_space<vmem>>, vector<384x128xf32>
    %cst = arith.constant dense<0.000000e+00> : vector<16x128xf32>
    %17 = tpu.matmul %15, %16, %cst {dimension_numbers = #tpu.dot_dimension_numbers<[1], [0], [0], [1], [0, 0, 1, 1], [], []>} : vector<16x384xf32>, vector<384x128xf32>, vector<16x128xf32> -> vector<16x128xf32>
    %c0_22 = arith.constant 0 : index
    %c0_23 = arith.constant 0 : index
    %18 = vector.load %arg5[%c0_22, %c0_23] : memref<1x128xf32, #tpu.memory_space<vmem>>, vector<1x128xf32>
    %19 = vector.broadcast %18 : vector<1x128xf32> to vector<16x128xf32>
    %20 = arith.addf %17, %19 : vector<16x128xf32>
    %c0_24 = arith.constant 0 : index
    %c0_25 = arith.constant 0 : index
    %c0_26 = arith.constant 0 : index
    %21 = vector.load %arg6[%c0_24, %c0_25, %c0_26] : memref<1x16x128xf32, #tpu.memory_space<vmem>>, vector<1x16x128xf32>
    %22 = vector.shape_cast %21 : vector<1x16x128xf32> to vector<16x128xf32>
    %23 = vector.shape_cast %20 : vector<16x128xf32> to vector<1x16x128xf32>
    tpu.vector_store %arg6[%c0_24, %c0_25, %c0_26], %23 {strides = array<i32>} : memref<1x16x128xf32, #tpu.memory_space<vmem>>, vector<1x16x128xf32>,
    return
  }
  func.func @transform_0(%arg0: i32, %arg1: i32) -> (i32, i32, i32) {
    %c0_i32 = arith.constant 0 : i32
    %c0_i32_0 = arith.constant 0 : i32
    return %arg0, %arg1, %c0_i32 : i32, i32, i32
  }
  func.func @transform_1(%arg0: i32, %arg1: i32) -> (i32, i32, i32) {
    %c1_i32 = arith.constant 1 : i32
    %0 = arith.addi %arg1, %c1_i32 : i32
    %c2_i32 = arith.constant 2 : i32
    %1 = arith.muli %0, %c2_i32 : i32
    %c0_i32 = arith.constant 0 : i32
    %c0_i32_0 = arith.constant 0 : i32
    return %arg0, %1, %c0_i32 : i32, i32, i32
  }
  func.func @transform_2(%arg0: i32, %arg1: i32) -> (i32, i32) {
    %c0_i32 = arith.constant 0 : i32
    %c0_i32_0 = arith.constant 0 : i32
    %c0_i32_1 = arith.constant 0 : i32
    return %c0_i32, %c0_i32_0 : i32, i32
  }
  func.func @transform_3(%arg0: i32, %arg1: i32) -> (i32, i32) {
    %c0_i32 = arith.constant 0 : i32
    %c0_i32_0 = arith.constant 0 : i32
    %c0_i32_1 = arith.constant 0 : i32
    return %c0_i32, %c0_i32_0 : i32, i32
  }
  func.func @transform_4(%arg0: i32, %arg1: i32) -> (i32, i32, i32) {
    %c0_i32 = arith.constant 0 : i32
    %c0_i32_0 = arith.constant 0 : i32
    return %arg0, %arg1, %c0_i32 : i32, i32, i32
  }
}

</mosaic_0001>

<llo_original>
// kernel: tpu_custom_call.1
$region0: #{tpu_custom_call.1}
  #allocation0 [shape = 'u32[]', space=smem, size = 0x4, offset = 0x4, fixed_abs, tag = 'smem constant byte address 0x4 - core index']
  #allocation1 [shape = 'u32[72,128]{1,0:T(1,128)}', space=vmem, size = 0x9000, scoped, tag = 'internal scratch']
  #allocation2 [shape = 'f32[16,384]{1,0:T(8,128)}', space=vmem, size = 0x6000, scoped, tag = 'scratch operand']
  %s0 = inlined_call_operand.hbm [shape: f32[2,24,128], index: 0, kind: input, shape index: {}]
  %s1 = inlined_call_operand.hbm [shape: f32[2,24,128], index: 1, kind: input, shape index: {}]
  %s2 = inlined_call_operand.hbm [shape: f32[384,128], index: 2, kind: input, shape index: {}]
  %s3 = inlined_call_operand.vmem [shape: f32[1,128], index: 3, kind: input, shape index: {}]
  %s4 = inlined_call_operand.hbm [shape: f32[2,16,128], index: 4, kind: output, shape index: {}]
  %s5 = sld [smem:[#allocation0]]
  $region61: #{tpu_custom_call.1} parent=0
    _
  %s7 = ssub.s32 1, %s5
  %s8 = scalar_select 0, %s7, %s5
  $region1: #{tpu_custom_call.1} parent=0
    #allocation3 [shape = 'u8[16384]{0}', space=vmem, size = 0x4000, scoped, tag = 'input window, operand 0']
    #allocation4 [shape = 's32[2]{0}', space=sflag, size = 0x8, scoped, tag = 'scoped memory for tpu_custom_call.1']
    #allocation5 [shape = 's32[2]{0}', space=sflag, size = 0x8, scoped, tag = 'scoped memory for tpu_custom_call.1']
    #allocation6 [shape = 'u8[8192]{0}', space=vmem, size = 0x2000, scoped, tag = 'input window, operand 1']
    #allocation7 [shape = 's32[2]{0}', space=sflag, size = 0x8, scoped, tag = 'scoped memory for tpu_custom_call.1']
    #allocation8 [shape = 'u8[196608]{0}', space=vmem, size = 0x30000, scoped, tag = 'input window, operand 2, single buffered']
    #allocation9 [shape = 'u8[16384]{0}', space=vmem, size = 0x4000, scoped, tag = 'output window, operand 0']
    %9 = vsyncpa [#allocation4], 0
    %s10 = scalar_lea.sflag [#allocation4], 1
    %11 = vsyncpa %s10, 0
    %12 = vsyncpa [#allocation7], 0
    %s13 = scalar_lea.sflag [#allocation7], 1
    %14 = vsyncpa %s13, 0
    %15 = vsyncpa [#allocation5], 0
    %s16 = scalar_lea.sflag [#allocation5], 1
    %17 = vsyncpa %s16, 0
    loop: start=0, step=1, limit=4
    $region2: #{tpu_custom_call.1} parent=1 // loop_pre_header
      _
    $region3: #{tpu_custom_call.1} parent=1 // loop_header
      %s19 = sphi 0, %s23
      %p20 = scmp.ge.s32.totalorder %s19, 4
      %s26 = sphi 0, %s38
      %s27 = sphi 0, %s34
      %s28 = sphi 0, %s26
      %s29 = sphi 0, %s27
      %s30 = sphi 0, %s28
      %s31 = sphi 0, %s29
      %s43 = sphi 0, %s45
      %s46 = sphi 0, %s43
      %s47 = sphi 0, %s46
      %s63 = sphi 0, %s47
      %s75 = sphi 0, %s77
      %s78 = sphi 0, %s75
      %s79 = sphi 0, %s78
      %s95 = sphi 0, %s79
      %s99 = sphi 0, %s99
      %s101 = sphi 0, %s99
      %s102 = sphi 0, %s101
      %s116 = sphi 0, %s102
      %s120 = sphi 0, %s120
      %s122 = sphi 0, %s120
      %s123 = sphi 0, %s122
      %s137 = sphi 0, %s123
      %s145 = sphi 0, %s147
      %s148 = sphi 0, %s145
      %s149 = sphi 0, %s148
      %s165 = sphi 0, %s149
    $region4: #{tpu_custom_call.1} parent=1 // loop_header_branch
      %22 = sbr.rel (%p20) target = $region8
    $region5: #{tpu_custom_call.1} parent=1 // loop_body
      %s24 = ssub.s32 %s19, 1
      %s25 = ssub.s32 %s19, 2
      %s32 = sadd.s32 1, %s27
      %p33 = scmp.ge.s32.totalorder %s32, 1
      %s34 = scalar_select %p33, 0, %s32
      %s35 = sadd.s32 1, %s26
      %s36 = scalar_select %p33, %s35, %s26
      %p37 = scmp.ge.s32.totalorder %s36, 2
      %s38 = scalar_select %p37, 0, %s36
      %s39 = ssub.s32 %s26, %s38
      %s40 = ssub.s32 %s27, %s34
      %s41 = sor.u32 %s39, %s40
      %p42 = scmp.eq.s32.totalorder %s41, 0
      %s44 = sadd.s32 %s43, 1
      %s45 = scalar_select %p42, %s43, %s44
      %p48 = pneg %p42
      %p49 = scmp.eq.s32.totalorder %s19, 1
      %p50 = por %p48, %p49
      %p51 = scmp.ne.s32.totalorder %s43, %s46
      %p52 = scmp.eq.s32.totalorder %s19, 0
      %p53 = por %p51, %p52
      %p54 = scmp.ne.s32.totalorder %s43, %s46
      %p55 = scmp.eq.s32.totalorder %s24, 1
      %p56 = por %p54, %p55
      %p57 = scmp.ne.s32.totalorder %s46, %s47
      %p58 = scmp.eq.s32.totalorder %s24, 0
      %p59 = por %p57, %p58
      %p60 = scmp.ne.s32.totalorder %s46, %s47
      %p61 = scmp.eq.s32.totalorder %s25, 1
      %p62 = por %p60, %p61
      %p64 = scmp.ne.s32.totalorder %s47, %s63
      %p65 = scmp.eq.s32.totalorder %s25, 0
      %p66 = por %p64, %p65
      %s67 = sadd.s32 %s27, 1
      %s68 = smul.u32 %s67, 2
      %s69 = sadd.s32 %s34, 1
      %s70 = smul.u32 %s69, 2
      %s71 = ssub.s32 %s26, %s38
      %s72 = ssub.s32 %s68, %s70
      %s73 = sor.u32 %s71, %s72
      %p74 = scmp.eq.s32.totalorder %s73, 0
      %s76 = sadd.s32 %s75, 1
      %s77 = scalar_select %p74, %s75, %s76
      %p80 = pneg %p74
      %p81 = scmp.eq.s32.totalorder %s19, 1
      %p82 = por %p80, %p81
      %p83 = scmp.ne.s32.totalorder %s75, %s78
      %p84 = scmp.eq.s32.totalorder %s19, 0
      %p85 = por %p83, %p84
      %p86 = scmp.ne.s32.totalorder %s75, %s78
      %p87 = scmp.eq.s32.totalorder %s24, 1
      %p88 = por %p86, %p87
      %p89 = scmp.ne.s32.totalorder %s78, %s79
      %p90 = scmp.eq.s32.totalorder %s24, 0
      %p91 = por %p89, %p90
      %p92 = scmp.ne.s32.totalorder %s78, %s79
      %p93 = scmp.eq.s32.totalorder %s25, 1
      %p94 = por %p92, %p93
      %p96 = scmp.ne.s32.totalorder %s79, %s95
      %p97 = scmp.eq.s32.totalorder %s25, 0
      %p98 = por %p96, %p97
      %s100 = sadd.s32 %s99, 1
      %p103 = scmp.eq.s32.totalorder %s19, 1
      %p104 = scmp.ne.s32.totalorder %s99, %s101
      %p105 = scmp.eq.s32.totalorder %s19, 0
      %p106 = por %p104, %p105
      %p107 = scmp.ne.s32.totalorder %s99, %s101
      %p108 = scmp.eq.s32.totalorder %s24, 1
      %p109 = por %p107, %p108
      %p110 = scmp.ne.s32.totalorder %s101, %s102
      %p111 = scmp.eq.s32.totalorder %s24, 0
      %p112 = por %p110, %p111
      %p113 = scmp.ne.s32.totalorder %s101, %s102
      %p114 = scmp.eq.s32.totalorder %s25, 1
      %p115 = por %p113, %p114
      %p117 = scmp.ne.s32.totalorder %s102, %s116
      %p118 = scmp.eq.s32.totalorder %s25, 0
      %p119 = por %p117, %p118
      %s121 = sadd.s32 %s120, 1
      %p124 = scmp.eq.s32.totalorder %s19, 1
      %p125 = scmp.ne.s32.totalorder %s120, %s122
      %p126 = scmp.eq.s32.totalorder %s19, 0
      %p127 = por %p125, %p126
      %p128 = scmp.ne.s32.totalorder %s120, %s122
      %p129 = scmp.eq.s32.totalorder %s24, 1
      %p130 = por %p128, %p129
      %p131 = scmp.ne.s32.totalorder %s122, %s123
      %p132 = scmp.eq.s32.totalorder %s24, 0
      %p133 = por %p131, %p132
      %p134 = scmp.ne.s32.totalorder %s122, %s123
      %p135 = scmp.eq.s32.totalorder %s25, 1
      %p136 = por %p134, %p135
      %p138 = scmp.ne.s32.totalorder %s123, %s137
      %p139 = scmp.eq.s32.totalorder %s25, 0
      %p140 = por %p138, %p139
      %s141 = ssub.s32 %s26, %s38
      %s142 = ssub.s32 %s27, %s34
      %s143 = sor.u32 %s141, %s142
      %p144 = scmp.eq.s32.totalorder %s143, 0
      %s146 = sadd.s32 %s145, 1
      %s147 = scalar_select %p144, %s145, %s146
      %p150 = pneg %p144
      %p151 = scmp.eq.s32.totalorder %s19, 1
      %p152 = por %p150, %p151
      %p153 = scmp.ne.s32.totalorder %s145, %s148
      %p154 = scmp.eq.s32.totalorder %s19, 0
      %p155 = por %p153, %p154
      %p156 = scmp.ne.s32.totalorder %s145, %s148
      %p157 = scmp.eq.s32.totalorder %s24, 1
      %p158 = por %p156, %p157
      %p159 = scmp.ne.s32.totalorder %s148, %s149
      %p160 = scmp.eq.s32.totalorder %s24, 0
      %p161 = por %p159, %p160
      %p162 = scmp.ne.s32.totalorder %s148, %s149
      %p163 = scmp.eq.s32.totalorder %s25, 1
      %p164 = por %p162, %p163
      %p166 = scmp.ne.s32.totalorder %s149, %s165
      %p167 = scmp.eq.s32.totalorder %s25, 0
      %p168 = por %p166, %p167
      %p169 = scmp.le.s32.totalorder 1, %s19
      %p170 = scmp.lt.s32.totalorder %s19, 3
      %p171 = pnand %p169, %p170
      %p172 = pneg %p171
      // Predicated region
      $region9: #{tpu_custom_call.1} parent=5 // pred_check
        _
      $region10: #{tpu_custom_call.1} parent=5 // pred_check_branch
        %174 = sbr.rel (%p171) target = $region12
      $region11: #{tpu_custom_call.1} parent=5 // pred_region
        %s175 = ssub.s32 %s19, 1
        // Predicated region
        $region13: #{tpu_custom_call.1} parent=11 // pred_check
          %p176 = pneg %p112
        $region14: #{tpu_custom_call.1} parent=11 // pred_check_branch
          %178 = sbr.rel (%p176) target = $region16
        $region15: #{tpu_custom_call.1} parent=11 // pred_region
          %180 = vsyncadd [#allocation7], 0
          %s181 = sshll.u32 %s2, 4
          %s182 = int_to_ptr.hbm [resolvable:$true] %s181
          %s183 = sshll.u32 [#allocation8], 4
          %s184 = int_to_ptr.vmem [resolvable:$true] %s183
          %189 = dma.hbm_to_vmem [thread:$0]  %s182, 6144, %s184, [#allocation7], 128, 128, 8
        $region16: #{tpu_custom_call.1} parent=11 // pred_fallthru
          _
        // Predicated region
        $region17: #{tpu_custom_call.1} parent=11 // pred_check
          %p190 = pneg %p133
        $region18: #{tpu_custom_call.1} parent=11 // pred_check_branch
          %192 = sbr.rel (%p190) target = $region20
        $region19: #{tpu_custom_call.1} parent=11 // pred_region
          _
        $region20: #{tpu_custom_call.1} parent=11 // pred_fallthru
          _
      $region12: #{tpu_custom_call.1} parent=5 // pred_fallthru
        _
      %p193 = scmp.lt.s32.totalorder %s19, 2
      // Predicated region
      $region21: #{tpu_custom_call.1} parent=5 // pred_check
        %p194 = pneg %p193
      $region22: #{tpu_custom_call.1} parent=5 // pred_check_branch
        %196 = sbr.rel (%p194) target = $region24
      $region23: #{tpu_custom_call.1} parent=5 // pred_region
        // Predicated region
        $region25: #{tpu_custom_call.1} parent=23 // pred_check
          %p197 = pneg %p53
        $region26: #{tpu_custom_call.1} parent=23 // pred_check_branch
          %199 = sbr.rel (%p197) target = $region28
        $region27: #{tpu_custom_call.1} parent=23 // pred_region
          %s200 = sand.u32 %s43, 1
          %s201 = scalar_lea.sflag [#allocation4], %s200
          %s202 = sand.u32 %s43, 1
          %s203 = smul.addr %s202, 16
          %s204 = scalar_lea.vmem [#allocation3], %s203
          %s205 = smul.u32 2, %s27
          %s206 = ssub.s32 3, %s205
          %p207 = scmp.lt.s32.totalorder %s206, 2
          %s208 = scalar_select %p207, %s206, 2
          %s209 = smul.u32 8, %s208
          %s210 = ssub.s32 16, %s209
          %s211 = sshll.u32 %s210, 4
          %212 = vsyncadd %s201, %s211
          %p213 = scmp.ne.s32.totalorder 0, %s209
          %s214 = smul.addr %s26, 3
          %s215 = sadd.s32 %s205, %s214
          %s216 = smul.addr %s215, 8
          %s217 = scalar_lea.hbm %s0, %s216
          %s218 = smul.u32 8, %s208
          %s219 = sshll.u32 %s217, 4
          %s220 = int_to_ptr.hbm [resolvable:$true] %s219
          %s221 = sshll.u32 %s204, 4
          %s222 = int_to_ptr.vmem [resolvable:$true] %s221
          %s223 = sshll.u32 %s218, 4
          %227 = dma.hbm_to_vmem [thread:$0]  (%p213), %s220, %s223, %s222, %s201, 128, 128, 8
        $region28: #{tpu_custom_call.1} parent=23 // pred_fallthru
          _
        // Predicated region
        $region29: #{tpu_custom_call.1} parent=23 // pred_check
          %p228 = pneg %p85
        $region30: #{tpu_custom_call.1} parent=23 // pred_check_branch
          %230 = sbr.rel (%p228) target = $region32
        $region31: #{tpu_custom_call.1} parent=23 // pred_region
          %s231 = sand.u32 %s19, 1
          %s232 = scalar_lea.sflag [#allocation7], %s231
          %s233 = sand.u32 %s75, 1
          %s234 = smul.addr %s233, 8
          %s235 = scalar_lea.vmem [#allocation6], %s234
          %s236 = sadd.s32 %s27, 1
          %s237 = smul.u32 %s236, 2
          %239 = vsyncadd %s232, 0
          %s240 = smul.addr %s26, 3
          %s241 = sadd.s32 %s237, %s240
          %s242 = smul.addr %s241, 8
          %s243 = scalar_lea.hbm %s1, %s242
          %s245 = sshll.u32 %s243, 4
          %s246 = int_to_ptr.hbm [resolvable:$true] %s245
          %s247 = sshll.u32 %s235, 4
          %s248 = int_to_ptr.vmem [resolvable:$true] %s247
          %250 = dma.hbm_to_vmem [thread:$0]  %s246, 128, %s248, %s232
        $region32: #{tpu_custom_call.1} parent=23 // pred_fallthru
          _
      $region24: #{tpu_custom_call.1} parent=5 // pred_fallthru
        _
      %p251 = scmp.le.s32.totalorder 1, %s19
      %p252 = scmp.lt.s32.totalorder %s19, 3
      %p253 = pnand %p251, %p252
      %p254 = pneg %p253
      // Predicated region
      $region33: #{tpu_custom_call.1} parent=5 // pred_check
        _
      $region34: #{tpu_custom_call.1} parent=5 // pred_check_branch
        %256 = sbr.rel (%p253) target = $region36
      $region35: #{tpu_custom_call.1} parent=5 // pred_region
        %s257 = ssub.s32 %s19, 1
        %s258 = sand.u32 %s46, 1
        %s259 = scalar_lea.sflag [#allocation4], %s258
        %s260 = sand.u32 %s46, 1
        %s261 = smul.addr %s260, 16
        %s262 = scalar_lea.vmem [#allocation3], %s261
        // Predicated region
        $region37: #{tpu_custom_call.1} parent=35 // pred_check
          %p263 = pneg %p59
        $region38: #{tpu_custom_call.1} parent=35 // pred_check_branch
          %265 = sbr.rel (%p263) target = $region40
        $region39: #{tpu_custom_call.1} parent=35 // pred_region
          %267 = dma.done %s259, 256
        $region40: #{tpu_custom_call.1} parent=35 // pred_fallthru
          _
        %s268 = sand.u32 %s24, 1
        %s269 = scalar_lea.sflag [#allocation7], %s268
        %s270 = sand.u32 %s78, 1
        %s271 = smul.addr %s270, 8
        %s272 = scalar_lea.vmem [#allocation6], %s271
        // Predicated region
        $region41: #{tpu_custom_call.1} parent=35 // pred_check
          %p273 = pneg %p91
        $region42: #{tpu_custom_call.1} parent=35 // pred_check_branch
          %275 = sbr.rel (%p273) target = $region44
        $region43: #{tpu_custom_call.1} parent=35 // pred_region
          %277 = dma.done %s269, 128
        $region44: #{tpu_custom_call.1} parent=35 // pred_fallthru
          _
        // Predicated region
        $region45: #{tpu_custom_call.1} parent=35 // pred_check
          %p278 = pneg %p112
        $region46: #{tpu_custom_call.1} parent=35 // pred_check_branch
          %280 = sbr.rel (%p278) target = $region48
        $region47: #{tpu_custom_call.1} parent=35 // pred_region
          %282 = dma.done [#allocation7], 6144
        $region48: #{tpu_custom_call.1} parent=35 // pred_fallthru
          _
        %s283 = sand.u32 %s46, 1
        %s284 = scalar_lea.sflag [#allocation4], %s283
        %s285 = sand.u32 %s46, 1
        %s286 = smul.addr %s285, 16
        %s287 = scalar_lea.vmem [#allocation3], %s286
        %p288 = pneg %p59
        %p289 = pneg %p56
        %s290 = sand.u32 %s24, 1
        %s291 = scalar_lea.sflag [#allocation7], %s290
        %s292 = sand.u32 %s78, 1
        %s293 = smul.addr %s292, 8
        %s294 = scalar_lea.vmem [#allocation6], %s293
        %p295 = pneg %p91
        %p296 = pneg %p88
        %p297 = pneg %p112
        %p298 = pneg %p109
        %p299 = pneg %p133
        %p300 = pneg %p130
        %p301 = pneg %p161
        %p302 = pneg %p158
        %s303 = sand.u32 %s148, 1
        %s304 = scalar_lea.sflag [#allocation5], %s303
        %s305 = sand.u32 %s148, 1
        %s306 = smul.addr %s305, 16
        %s307 = scalar_lea.vmem [#allocation9], %s306
        %s308 = smul.u32 2, %s29
        %s309 = ssub.s32 3, %s308
        %p310 = scmp.lt.s32.totalorder %s309, 2
        %s311 = scalar_select %p310, %s309, 2
        %s312 = smul.u32 8, %s311
        %s313 = sadd.s32 %s29, 1
        %s314 = smul.u32 %s313, 2
        %s315 = smul.u32 2, %s29
        %v316 = vld [vmem:[%s262] sm:$0xff]
        %v317 = vld [vmem:[%s262 + $0x8] sm:$0xff]
        %318 = vst [vmem:[#allocation2] sm:$0xff] %v316
        %319 = vst [vmem:[#allocation2 + $0x18] sm:$0xff] %v317
        %v320 = vld [vmem:[%s262 + $0x1] sm:$0xff]
        %v321 = vld [vmem:[%s262 + $0x9] sm:$0x7f]
        %322 = vst [vmem:[#allocation2 + $0x8] sm:$0xff] %v320
        %323 = vst [vmem:[#allocation2 + $0x20] sm:$0x7f] %v321
        %v324 = vld [vmem:[%s272] sm:$0x1]
        %325 = vst [vmem:[#allocation2 + $0x27] sm:$0x1] %v324
        %v326 = vld [vmem:[%s262 + $0x2] sm:$0xff]
        %v327 = vld [vmem:[%s262 + $0xa] sm:$0x3f]
        %328 = vst [vmem:[#allocation2 + $0x10] sm:$0xff] %v326
        %329 = vst [vmem:[#allocation2 + $0x28] sm:$0x3f] %v327
        %v330 = vld [vmem:[%s272] sm:$0x3]
        %v332 = vrot.slane %v330, 2
        %334 = vst [vmem:[#allocation2 + $0x28] sm:$0xc0] %v332
        %v335 = vld [vmem:[#allocation2] sm:$0xff]
        %v336 = vld [vmem:[#allocation2 + $0x8] sm:$0xff]
        %v337 = vld [vmem:[#allocation2 + $0x10] sm:$0xff]
        %v338 = vld [vmem:[#allocation2 + $0x18] sm:$0xff]
        %v339 = vld [vmem:[#allocation2 + $0x20] sm:$0xff]
        %v340 = vld [vmem:[#allocation2 + $0x28] sm:$0xff]
        %v341 = vld [vmem:[#allocation8] sm:$0xff]
        %v342 = vld [vmem:[#allocation8 + $0x8] sm:$0xff]
        %v343 = vld [vmem:[#allocation8 + $0x10] sm:$0xff]
        %v344 = vld [vmem:[#allocation8 + $0x18] sm:$0xff]
        %v345 = vld [vmem:[#allocation8 + $0x20] sm:$0xff]
        %v346 = vld [vmem:[#allocation8 + $0x28] sm:$0xff]
        %v347 = vld [vmem:[#allocation8 + $0x30] sm:$0xff]
        %v348 = vld [vmem:[#allocation8 + $0x38] sm:$0xff]
        %v349 = vld [vmem:[#allocation8 + $0x40] sm:$0xff]
        %v350 = vld [vmem:[#allocation8 + $0x48] sm:$0xff]
        %v351 = vld [vmem:[#allocation8 + $0x50] sm:$0xff]
        %v352 = vld [vmem:[#allocation8 + $0x58] sm:$0xff]
        %v353 = vld [vmem:[#allocation8 + $0x60] sm:$0xff]
        %v354 = vld [vmem:[#allocation8 + $0x68] sm:$0xff]
        %v355 = vld [vmem:[#allocation8 + $0x70] sm:$0xff]
        %v356 = vld [vmem:[#allocation8 + $0x78] sm:$0xff]
        %v357 = vld [vmem:[#allocation8 + $0x80] sm:$0xff]
        %v358 = vld [vmem:[#allocation8 + $0x88] sm:$0xff]
        %v359 = vld [vmem:[#allocation8 + $0x90] sm:$0xff]
        %v360 = vld [vmem:[#allocation8 + $0x98] sm:$0xff]
        %v361 = vld [vmem:[#allocation8 + $0xa0] sm:$0xff]
        %v362 = vld [vmem:[#allocation8 + $0xa8] sm:$0xff]
        %v363 = vld [vmem:[#allocation8 + $0xb0] sm:$0xff]
        %v364 = vld [vmem:[#allocation8 + $0xb8] sm:$0xff]
        %v365 = vld [vmem:[#allocation8 + $0xc0] sm:$0xff]
        %v366 = vld [vmem:[#allocation8 + $0xc8] sm:$0xff]
        %v367 = vld [vmem:[#allocation8 + $0xd0] sm:$0xff]
        %v368 = vld [vmem:[#allocation8 + $0xd8] sm:$0xff]
        %v369 = vld [vmem:[#allocation8 + $0xe0] sm:$0xff]
        %v370 = vld [vmem:[#allocation8 + $0xe8] sm:$0xff]
        %v371 = vld [vmem:[#allocation8 + $0xf0] sm:$0xff]
        %v372 = vld [vmem:[#allocation8 + $0xf8] sm:$0xff]
        %v373 = vld [vmem:[#allocation8 + $0x100] sm:$0xff]
        %v374 = vld [vmem:[#allocation8 + $0x108] sm:$0xff]
        %v375 = vld [vmem:[#allocation8 + $0x110] sm:$0xff]
        %v376 = vld [vmem:[#allocation8 + $0x118] sm:$0xff]
        %v377 = vld [vmem:[#allocation8 + $0x120] sm:$0xff]
        %v378 = vld [vmem:[#allocation8 + $0x128] sm:$0xff]
        %v379 = vld [vmem:[#allocation8 + $0x130] sm:$0xff]
        %v380 = vld [vmem:[#allocation8 + $0x138] sm:$0xff]
        %v381 = vld [vmem:[#allocation8 + $0x140] sm:$0xff]
        %v382 = vld [vmem:[#allocation8 + $0x148] sm:$0xff]
        %v383 = vld [vmem:[#allocation8 + $0x150] sm:$0xff]
        %v384 = vld [vmem:[#allocation8 + $0x158] sm:$0xff]
        %v385 = vld [vmem:[#allocation8 + $0x160] sm:$0xff]
        %v386 = vld [vmem:[#allocation8 + $0x168] sm:$0xff]
        %v387 = vld [vmem:[#allocation8 + $0x170] sm:$0xff]
        %v388 = vld [vmem:[#allocation8 + $0x178] sm:$0xff]
        %v389 = vld [vmem:[%s3] sm:$0x1]
        %v391 = vperm.slane %v389, 0
        %393 = vmatpush.msra.mxu0 %v356
        %394 = vmatpush.msra.mxu0 %v355
        %395 = vmatpush.msra.mxu0 %v354
        %396 = vmatpush.msra.mxu0 %v353
        %397 = vmatpush.msra.mxu0 %v352
        %398 = vmatpush.msra.mxu0 %v351
        %399 = vmatpush.msra.mxu0 %v350
        %400 = vmatpush.msra.mxu0 %v349
        %401 = vmatpush.msra.mxu0 %v348
        %402 = vmatpush.msra.mxu0 %v347
        %403 = vmatpush.msra.mxu0 %v346
        %404 = vmatpush.msra.mxu0 %v345
        %405 = vmatpush.msra.mxu0 %v344
        %406 = vmatpush.msra.mxu0 %v343
        %407 = vmatpush.msra.mxu0 %v342
        %408 = vmatpush.msra.mxu0 %v341
        %409 = vmatmul.f32.gmra.mxu0 %v335
        %v410 = vpop.f32.mrf.mxu0
        %v411 = vadd.f32 %v391, %v410
        %412 = vmatmul.f32.gmra.mxu0 %v338
        %v413 = vpop.f32.mrf.mxu0
        %v414 = vadd.f32 %v391, %v413
        %415 = vdwg.mxu0
        %416 = vmatpush.msra.mxu0 %v372
        %417 = vmatpush.msra.mxu0 %v371
        %418 = vmatpush.msra.mxu0 %v370
        %419 = vmatpush.msra.mxu0 %v369
        %420 = vmatpush.msra.mxu0 %v368
        %421 = vmatpush.msra.mxu0 %v367
        %422 = vmatpush.msra.mxu0 %v366
        %423 = vmatpush.msra.mxu0 %v365
        %424 = vmatpush.msra.mxu0 %v364
        %425 = vmatpush.msra.mxu0 %v363
        %426 = vmatpush.msra.mxu0 %v362
        %427 = vmatpush.msra.mxu0 %v361
        %428 = vmatpush.msra.mxu0 %v360
        %429 = vmatpush.msra.mxu0 %v359
        %430 = vmatpush.msra.mxu0 %v358
        %431 = vmatpush.msra.mxu0 %v357
        %432 = vmatmul.f32.gmra.mxu0 %v336
        %v433 = vpop.f32.mrf.mxu0
        %v434 = vadd.f32 %v411, %v433
        %435 = vmatmul.f32.gmra.mxu0 %v339
        %v436 = vpop.f32.mrf.mxu0
        %v437 = vadd.f32 %v414, %v436
        %438 = vdwg.mxu0
        %439 = vmatpush.msra.mxu0 %v388
        %440 = vmatpush.msra.mxu0 %v387
        %441 = vmatpush.msra.mxu0 %v386
        %442 = vmatpush.msra.mxu0 %v385
        %443 = vmatpush.msra.mxu0 %v384
        %444 = vmatpush.msra.mxu0 %v383
        %445 = vmatpush.msra.mxu0 %v382
        %446 = vmatpush.msra.mxu0 %v381
        %447 = vmatpush.msra.mxu0 %v380
        %448 = vmatpush.msra.mxu0 %v379
        %449 = vmatpush.msra.mxu0 %v378
        %450 = vmatpush.msra.mxu0 %v377
        %451 = vmatpush.msra.mxu0 %v376
        %452 = vmatpush.msra.mxu0 %v375
        %453 = vmatpush.msra.mxu0 %v374
        %454 = vmatpush.msra.mxu0 %v373
        %455 = vmatmul.f32.gmra.mxu0 %v337
        %v456 = vpop.f32.mrf.mxu0
        %v457 = vadd.f32 %v434, %v456
        %458 = vmatmul.f32.gmra.mxu0 %v340
        %v459 = vpop.f32.mrf.mxu0
        %v460 = vadd.f32 %v437, %v459
        %461 = vdwg.mxu0
        %462 = vst [vmem:[%s307] sm:$0xff] %v457
        %463 = vst [vmem:[%s307 + $0x8] sm:$0xff] %v460
        %s464 = sand.u32 %s148, 1
        %s465 = scalar_lea.sflag [#allocation5], %s464
        %s466 = sand.u32 %s148, 1
        %s467 = smul.addr %s466, 16
        %s468 = scalar_lea.vmem [#allocation9], %s467
        // Predicated region
        $region49: #{tpu_custom_call.1} parent=35 // pred_check
          %p469 = pneg %p158
        $region50: #{tpu_custom_call.1} parent=35 // pred_check_branch
          %471 = sbr.rel (%p469) target = $region52
        $region51: #{tpu_custom_call.1} parent=35 // pred_region
          %s472 = smul.u32 2, %s29
          %474 = vsyncadd %s465, 0
          %s475 = smul.addr %s28, 2
          %s476 = sadd.s32 %s472, %s475
          %s477 = smul.addr %s476, 8
          %s478 = scalar_lea.hbm %s4, %s477
          %s479 = sshll.u32 %s468, 4
          %s480 = int_to_ptr.vmem [resolvable:$true] %s479
          %s481 = sshll.u32 %s478, 4
          %s482 = int_to_ptr.hbm [resolvable:$true] %s481
          %487 = dma.vmem_to_hbm [thread:$0]  %s480, 256, %s482, %s465, 128, 128, 8
        $region52: #{tpu_custom_call.1} parent=35 // pred_fallthru
          _
      $region36: #{tpu_custom_call.1} parent=5 // pred_fallthru
        _
      %p488 = scmp.le.s32.totalorder 2, %s19
      // Predicated region
      $region53: #{tpu_custom_call.1} parent=5 // pred_check
        %p489 = pneg %p488
      $region54: #{tpu_custom_call.1} parent=5 // pred_check_branch
        %491 = sbr.rel (%p489) target = $region56
      $region55: #{tpu_custom_call.1} parent=5 // pred_region
        %s492 = ssub.s32 %s19, 2
        // Predicated region
        $region57: #{tpu_custom_call.1} parent=55 // pred_check
          %p493 = pneg %p164
        $region58: #{tpu_custom_call.1} parent=55 // pred_check_branch
          %495 = sbr.rel (%p493) target = $region60
        $region59: #{tpu_custom_call.1} parent=55 // pred_region
          %s496 = sand.u32 %s149, 1
          %s497 = scalar_lea.sflag [#allocation5], %s496
          %s498 = sand.u32 %s149, 1
          %s499 = smul.addr %s498, 16
          %s500 = scalar_lea.vmem [#allocation9], %s499
          %502 = dma.done %s497, 256
        $region60: #{tpu_custom_call.1} parent=55 // pred_fallthru
          _
      $region56: #{tpu_custom_call.1} parent=5 // pred_fallthru
        _
    $region6: #{tpu_custom_call.1} parent=1 // loop_footer
      %s23 = sadd.s32 1, %s19
    $region7: #{tpu_custom_call.1} parent=1 // loop_footer_branch
      %18 = sbr.rel target = $region3
    $region8: #{tpu_custom_call.1} parent=1 // loop_exit
      _
    %503 = vsyncpa [#allocation4], 1
    %s504 = scalar_lea.sflag [#allocation4], 1
    %505 = vsyncpa %s504, 1
    %506 = vsyncpa [#allocation7], 1
    %s507 = scalar_lea.sflag [#allocation7], 1
    %508 = vsyncpa %s507, 1
    %509 = vsyncpa [#allocation5], 1
    %s510 = scalar_lea.sflag [#allocation5], 1
    %511 = vsyncpa %s510, 1

</llo_original>
